<compile_context>
chip_gen: v7x
topology: tpu7x:2x2x1
jax: 0.10.0
libtpu: 0.0.40
codegen_flags: <defaults>
</compile_context>

<pallas_src>
import functools

import jax
import jax.numpy as jnp
from jax.experimental import pallas as pl
from jax.experimental.pallas import tpu as pltpu


# ----------------------------------------------------------------------------
# helpers
# ----------------------------------------------------------------------------
def _full_spec(shape):
    nd = len(shape)
    return pl.BlockSpec(shape, lambda i, _nd=nd: (0,) * _nd)


# ----------------------------------------------------------------------------
# Fused kernel: contrastive CEs + classifier head + total loss (one HBM store)
# ----------------------------------------------------------------------------
def _fused_simclr_kernel(q_ref, qi1_ref, qi2_ref, ql_ref, ki1_ref, ki2_ref,
                         kl_ref, w1_ref, b1_ref, w2_ref, b2_ref, w3_ref, b3_ref,
                         out_ref, *, temperature, esp, a, b, c, d):
    q = q_ref[...].astype(jnp.float32)                             # [B, D]
    B = q.shape[0]

    # F.normalize(q, dim=-1): rsqrt on the EUP (1e-12 norm floor == 1e-24 sq).
    sumsq = jnp.sum(q * q, axis=-1, keepdims=True)
    qn = q * jax.lax.rsqrt(jnp.maximum(sumsq, 1e-24))

    # Cosine-similarity on the MXU: bf16 operands, f32 accumulation.
    # Single-device path: k == q, so reuse qn for both operands.
    qn_bf = qn.astype(jnp.bfloat16)
    logits = jax.lax.dot_general(
        qn_bf, qn_bf, (((1,), (1,)), ((), ())),
        preferred_element_type=jnp.float32) * (1.0 / temperature)  # [B, N]

    qi1 = qi1_ref[...]; qi2 = qi2_ref[...]; ql = ql_ref[...]       # [B, 1] int32
    ki1 = ki1_ref[...]; ki2 = ki2_ref[...]; kl = kl_ref[...]       # [1, N] int32

    # Boolean planes, built once (VPU compares).
    same_model = qi1 == ki1                                        # [B, N]
    same_set = qi2 == ki2
    same_label = ql == kl
    sm = same_model.astype(jnp.float32)
    ss = same_set.astype(jnp.float32)
    sl = same_label.astype(jnp.float32)
    xm = jnp.logical_xor(same_set, same_model).astype(jnp.float32)
    xl = jnp.logical_xor(same_set, same_label).astype(jnp.float32)

    def rowsum(x):
        return jnp.sum(x, axis=1, keepdims=True)                   # [B, 1]

    cnt_sm = rowsum(sm)
    cnt_ss = rowsum(ss)
    cnt_sl = rowsum(sl)

    # Positive averages: sum(logits * pos_mask) / max(count(pos_mask), esp).
    pos_model = rowsum(logits * sm) / jnp.maximum(cnt_sm, esp)
    pos_set = rowsum(logits * xm) / jnp.maximum(rowsum(xm), esp)
    pos_label = rowsum(logits * xl) / jnp.maximum(rowsum(xl), esp)
    pos_human = rowsum(logits * sl) / jnp.maximum(cnt_sl, esp)

    # Shared softmax machinery: the [B, N] exp is computed ONCE.
    # Row vector of variant v is cat([pos_v, logits * ~neg_mask_v]); masked
    # negatives contribute exp(0).  m_row >= rowmax(logits) >= pos_v and >= 0.
    m_row = jnp.maximum(jnp.max(logits, axis=1, keepdims=True), 0.0)
    E = jnp.exp(logits - m_row)                                    # [B, N]
    sum_E = rowsum(E)
    exp_neg_m = jnp.exp(-m_row)

    mE_sm = rowsum(E * sm)
    mE_ss = rowsum(E * ss)
    mE_sl = rowsum(E * sl)

    def ce(pos, cnt_neg, mE_neg):
        # CE against class 0 of cat([pos, logits * ~neg_mask]):
        #   lse = m + log(exp(pos-m) + count(neg)*exp(-m) + (sum_E - sum(E*neg)))
        denom = jnp.exp(pos - m_row) + cnt_neg * exp_neg_m + (sum_E - mE_neg)
        return m_row + jnp.log(denom) - pos                        # [B, 1]

    ce_model = ce(pos_model, cnt_sm, mE_sm)
    ce_set = ce(pos_set, cnt_ss, mE_ss)
    ce_label = ce(pos_label, cnt_sl, mE_sl)
    ce_human = ce(pos_human, cnt_sl, mE_sl)        # shares neg stats with label

    # Row-selection means (F.cross_entropy reduction='mean' over selected rows).
    mach = (ql == 0).astype(jnp.float32)                           # [B, 1]
    hum = (ql == 1).astype(jnp.float32)
    n_mach = jnp.sum(mach, keepdims=True)                          # (1, 1)
    n_hum = jnp.sum(hum, keepdims=True)

    def masked_mean(v, m_f, cnt):
        s = jnp.sum(v * m_f, keepdims=True)
        # empty selection -> 0 (torch guards the human case explicitly)
        return jnp.where(cnt > 0.0, s / jnp.maximum(cnt, 1.0), jnp.zeros_like(s))

    loss_model = masked_mean(ce_model, mach, n_mach)
    loss_set = masked_mean(ce_set, mach, n_mach)
    loss_label = masked_mean(ce_label, mach, n_mach)
    loss_human = masked_mean(ce_human, hum, n_hum)

    # ClassificationHead: Linear -> tanh -> Linear -> tanh -> Linear.
    h1 = jnp.tanh(jnp.dot(q, w1_ref[...], preferred_element_type=jnp.float32)
                  + b1_ref[...])
    h2 = jnp.tanh(jnp.dot(h1, w2_ref[...], preferred_element_type=jnp.float32)
                  + b2_ref[...])
    out = jnp.dot(h2, w3_ref[...], preferred_element_type=jnp.float32) \
        + b3_ref[...]                                              # [B, C]

    # F.cross_entropy(out, label) fused in-kernel (no lane-sparse [B,C] store).
    m_c = jnp.max(out, axis=1, keepdims=True)
    lse_c = m_c + jnp.log(jnp.sum(jnp.exp(out - m_c), axis=1, keepdims=True))
    col = jax.lax.broadcasted_iota(jnp.int32, out.shape, 1)
    picked = jnp.sum(out * (col == ql).astype(jnp.float32), axis=1, keepdims=True)
    loss_classify = jnp.sum(lse_c - picked, keepdims=True) * (1.0 / B)

    loss = (a * loss_model + b * loss_set + c * loss_label
            + (a + b + c) * loss_human + d * loss_classify)

    # One lane-dense store of all scalars: [loss, model, set, label, cls, human, 0, 0]
    lane = jax.lax.broadcasted_iota(jnp.int32, (1, 8), 1)
    packed = jnp.zeros((1, 8), jnp.float32)
    packed = jnp.where(lane == 5, loss_human, packed)
    packed = jnp.where(lane == 4, loss_classify, packed)
    packed = jnp.where(lane == 3, loss_label, packed)
    packed = jnp.where(lane == 2, loss_set, packed)
    packed = jnp.where(lane == 1, loss_model, packed)
    packed = jnp.where(lane == 0, loss, packed)
    out_ref[...] = packed


def fused_simclr_loss_pallas(q, indices1, indices2, label, params, *,
                             temperature, esp, a, b, c, d):
    w1, b1, w2, b2, w3, b3 = params
    col = lambda v: v.reshape(-1, 1).astype(jnp.int32)
    row = lambda v: v.reshape(1, -1).astype(jnp.int32)
    args = (q, col(indices1), col(indices2), col(label),
            row(indices1), row(indices2), row(label),
            w1, b1, w2, b2, w3, b3)
    kernel = functools.partial(
        _fused_simclr_kernel, temperature=float(temperature), esp=float(esp),
        a=float(a), b=float(b), c=float(c), d=float(d))
    return pl.pallas_call(
        kernel,
        out_shape=jax.ShapeDtypeStruct((1, 8), jnp.float32),
        grid=(1,),
        in_specs=[_full_spec(x.shape) for x in args],
        out_specs=_full_spec((1, 8)),
        compiler_params=pltpu.CompilerParams(
            dimension_semantics=("arbitrary",)),
    )(*args)


# ----------------------------------------------------------------------------
# Parameter init (deterministic, matches ClassificationHead.__init__ shapes)
# ----------------------------------------------------------------------------
def init_classifier_params(key, in_dim, out_dim):
    h1, h2 = in_dim // 4, in_dim // 16
    keys = jax.random.split(key, 6)

    def xavier(k, fan_in, fan_out):
        bound = (6.0 / (fan_in + fan_out)) ** 0.5
        # stored as [in, out] (torch Linear weight is [out, in]; fwd is x @ W.T)
        return jax.random.uniform(k, (fan_in, fan_out), jnp.float32, -bound, bound)

    def bias(k, n):
        return jax.random.normal(k, (1, n), jnp.float32) * 1e-6

    return (xavier(keys[0], in_dim, h1), bias(keys[1], h1),
            xavier(keys[2], h1, h2),     bias(keys[3], h2),
            xavier(keys[4], h2, out_dim), bias(keys[5], out_dim))


# ----------------------------------------------------------------------------
# Full forward (training path, opt.AA = False)
# ----------------------------------------------------------------------------
def simclr_classifier_forward(q, indices1, indices2, label, params, *,
                              temperature, esp, a, b, c, d):
    # single-device all_gather == identity; k = q.detach()
    k = jax.lax.stop_gradient(q)
    k_label = label

    losses = fused_simclr_loss_pallas(q, indices1, indices2, label, params,
                                      temperature=temperature, esp=esp,
                                      a=a, b=b, c=c, d=d)           # [1, 8]
    loss = losses[0, 0]
    loss_model = losses[0, 1]
    loss_set = losses[0, 2]
    loss_lbl = losses[0, 3]
    loss_classify = losses[0, 4]
    loss_human = losses[0, 5]
    return (loss, loss_model, loss_set, loss_lbl, loss_classify, loss_human,
            k, k_label)


# ----------------------------------------------------------------------------
# Pure-JAX f32 reference (mirrors the torch math) for a sanity check
# ----------------------------------------------------------------------------
def _reference_losses(q, indices1, indices2, label, params, *,
                      temperature, esp, a, b, c, d):
    w1, b1, w2, b2, w3, b3 = params
    qn = q / jnp.maximum(jnp.sqrt(jnp.sum(q * q, -1, keepdims=True)), 1e-12)
    logits = (qn @ qn.T) / temperature
    qi1 = indices1.reshape(-1, 1); ki1 = indices1.reshape(1, -1)
    qi2 = indices2.reshape(-1, 1); ki2 = indices2.reshape(1, -1)
    ql = label.reshape(-1, 1); kl = label.reshape(1, -1)
    same_model = qi1 == ki1; same_set = qi2 == ki2; same_label = ql == kl
    is_human = label == 1; is_machine = label == 0

    def ce_mean(pos_mask, neg_mask, row_mask):
        pm = pos_mask.astype(jnp.float32)
        pos = jnp.sum(logits * pm, 1) / jnp.maximum(jnp.sum(pm, 1), esp)
        neg = logits * (~neg_mask).astype(jnp.float32)
        full = jnp.concatenate([pos[:, None], neg], axis=1)
        ce = jax.nn.logsumexp(full, axis=1) - pos
        rm = row_mask.astype(jnp.float32)
        return jnp.sum(ce * rm) / jnp.maximum(jnp.sum(rm), 1.0)

    lm = ce_mean(same_model, same_model, is_machine)
    ls = ce_mean(jnp.logical_xor(same_set, same_model), same_set, is_machine)
    ll = ce_mean(jnp.logical_xor(same_set, same_label), same_label, is_machine)
    lh = ce_mean(same_label, same_label, is_human)

    h1 = jnp.tanh(q @ w1 + b1); h2 = jnp.tanh(h1 @ w2 + b2); out = h2 @ w3 + b3
    lse = jax.nn.logsumexp(out, axis=-1)
    picked = jnp.take_along_axis(out, label.reshape(-1, 1), axis=-1)[:, 0]
    lc = jnp.mean(lse - picked)
    total = a * lm + b * ls + c * ll + (a + b + c) * lh + d * lc
    return jnp.stack([total, lm, ls, ll, lc, lh])


# ----------------------------------------------------------------------------
if __name__ == "__main__":
    B = 8                    # batch
    D = 128                  # projection_size
    C = 4                    # classifier_dim
    temperature = 0.07
    esp = 1e-6
    a_, b_, c_, d_ = 1.0, 1.0, 1.0, 0.5

    key = jax.random.PRNGKey(0)
    k_q, k_i1, k_i2, k_lbl, k_par = jax.random.split(key, 5)

    q = jax.random.normal(k_q, (B, D), jnp.float32)          # encoder output stand-in
    indices1 = jax.random.randint(k_i1, (B,), 0, 3, jnp.int32)   # model id
    indices2 = jax.random.randint(k_i2, (B,), 0, 4, jnp.int32)   # set id
    label = jnp.array([1, 0, 0, 1, 0, 0, 1, 0], jnp.int32)       # human=1 / machine=0

    params = init_classifier_params(k_par, D, C)

    fwd = jax.jit(functools.partial(simclr_classifier_forward,
                                    temperature=temperature, esp=esp,
                                    a=a_, b=b_, c=c_, d=d_))
    outs = jax.block_until_ready(fwd(q, indices1, indices2, label, params))

    got = jnp.stack(outs[:6])
    ref = _reference_losses(q, indices1, indices2, label, params,
                            temperature=temperature, esp=esp,
                            a=a_, b=b_, c=c_, d=d_)
    got = jax.block_until_ready(got)
    ref = jax.block_until_ready(ref)

    assert bool(jnp.all(jnp.isfinite(got))), "non-finite loss"
    # loose tolerance: kernel uses bf16 MXU inputs (f32 accumulation) by design
    err = jnp.abs(got - ref)
    assert bool(jnp.all(err <= 0.1 + 0.05 * jnp.abs(ref))), \
        f"mismatch vs f32 reference: got={got}, ref={ref}"
    print("KERNEL_OK")
</pallas_src>

<mosaic_0001>
module attributes {stable_mosaic.version = 11 : i64} {
  func.func @_fused_simclr_kernel(%arg0: i32, %arg1: memref<8x128xf32, #tpu.memory_space<vmem>>, %arg2: memref<8x1xi32, #tpu.memory_space<vmem>>, %arg3: memref<8x1xi32, #tpu.memory_space<vmem>>, %arg4: memref<8x1xi32, #tpu.memory_space<vmem>>, %arg5: memref<1x8xi32, #tpu.memory_space<vmem>>, %arg6: memref<1x8xi32, #tpu.memory_space<vmem>>, %arg7: memref<1x8xi32, #tpu.memory_space<vmem>>, %arg8: memref<128x32xf32, #tpu.memory_space<vmem>>, %arg9: memref<1x32xf32, #tpu.memory_space<vmem>>, %arg10: memref<32x8xf32, #tpu.memory_space<vmem>>, %arg11: memref<1x8xf32, #tpu.memory_space<vmem>>, %arg12: memref<8x4xf32, #tpu.memory_space<vmem>>, %arg13: memref<1x4xf32, #tpu.memory_space<vmem>>, %arg14: memref<1x8xf32, #tpu.memory_space<vmem>>) attributes {dimension_semantics = [#tpu.dimension_semantics<arbitrary>], iteration_bounds = array<i64: 1>, scalar_prefetch = 0 : i64, scratch_operands = 0 : i64, tpu.core_type = #tpu.core_type<tc>, window_params = [{pipeline_mode = #tpu.pipeline_mode<synchronous>, transform_indices = @transform_0, window_bounds = array<i64: 8, 128>}, {pipeline_mode = #tpu.pipeline_mode<synchronous>, transform_indices = @transform_1, window_bounds = array<i64: 8, 1>}, {pipeline_mode = #tpu.pipeline_mode<synchronous>, transform_indices = @transform_2, window_bounds = array<i64: 8, 1>}, {pipeline_mode = #tpu.pipeline_mode<synchronous>, transform_indices = @transform_3, window_bounds = array<i64: 8, 1>}, {pipeline_mode = #tpu.pipeline_mode<synchronous>, transform_indices = @transform_4, window_bounds = array<i64: 1, 8>}, {pipeline_mode = #tpu.pipeline_mode<synchronous>, transform_indices = @transform_5, window_bounds = array<i64: 1, 8>}, {pipeline_mode = #tpu.pipeline_mode<synchronous>, transform_indices = @transform_6, window_bounds = array<i64: 1, 8>}, {pipeline_mode = #tpu.pipeline_mode<synchronous>, transform_indices = @transform_7, window_bounds = array<i64: 128, 32>}, {pipeline_mode = #tpu.pipeline_mode<synchronous>, transform_indices = @transform_8, window_bounds = array<i64: 1, 32>}, {pipeline_mode = #tpu.pipeline_mode<synchronous>, transform_indices = @transform_9, window_bounds = array<i64: 32, 8>}, {pipeline_mode = #tpu.pipeline_mode<synchronous>, transform_indices = @transform_10, window_bounds = array<i64: 1, 8>}, {pipeline_mode = #tpu.pipeline_mode<synchronous>, transform_indices = @transform_11, window_bounds = array<i64: 8, 4>}, {pipeline_mode = #tpu.pipeline_mode<synchronous>, transform_indices = @transform_12, window_bounds = array<i64: 1, 4>}, {pipeline_mode = #tpu.pipeline_mode<synchronous>, transform_indices = @transform_13, window_bounds = array<i64: 1, 8>}]} {
    %c0 = arith.constant 0 : index
    %c0_0 = arith.constant 0 : index
    %0 = vector.load %arg1[%c0, %c0_0] : memref<8x128xf32, #tpu.memory_space<vmem>>, vector<8x128xf32>
    %1 = arith.mulf %0, %0 : vector<8x128xf32>
    %cst = arith.constant dense<0.000000e+00> : vector<8xf32>
    %2 = vector.multi_reduction <add>, %1, %cst [1] : vector<8x128xf32> to vector<8xf32>
    %3 = vector.shape_cast %2 : vector<8xf32> to vector<8x1xf32>
    %cst_1 = arith.constant 1.000000e-24 : f32
    %4 = vector.broadcast %cst_1 : f32 to vector<8x1xf32>
    %5 = arith.maximumf %3, %4 : vector<8x1xf32>
    %6 = math.rsqrt %5 : vector<8x1xf32>
    %7 = vector.broadcast %6 : vector<8x1xf32> to vector<8x128xf32>
    %8 = arith.mulf %0, %7 : vector<8x128xf32>
    %9 = arith.truncf %8 : vector<8x128xf32> to vector<8x128xbf16>
    %cst_2 = arith.constant dense<0.000000e+00> : vector<8x8xf32>
    %10 = tpu.matmul %9, %9, %cst_2 {dimension_numbers = #tpu.dot_dimension_numbers<[1], [1], [0], [0], [0, 0, 1, 0], [], []>} : vector<8x128xbf16>, vector<8x128xbf16>, vector<8x8xf32> -> vector<8x8xf32>
    %cst_3 = arith.constant 14.2857141 : f32
    %11 = vector.broadcast %cst_3 : f32 to vector<8x8xf32>
    %12 = arith.mulf %10, %11 : vector<8x8xf32>
    %c0_4 = arith.constant 0 : index
    %c0_5 = arith.constant 0 : index
    %13 = vector.load %arg2[%c0_4, %c0_5] : memref<8x1xi32, #tpu.memory_space<vmem>>, vector<8x1xi32>
    %c0_6 = arith.constant 0 : index
    %c0_7 = arith.constant 0 : index
    %14 = vector.load %arg3[%c0_6, %c0_7] : memref<8x1xi32, #tpu.memory_space<vmem>>, vector<8x1xi32>
    %c0_8 = arith.constant 0 : index
    %c0_9 = arith.constant 0 : index
    %15 = vector.load %arg4[%c0_8, %c0_9] : memref<8x1xi32, #tpu.memory_space<vmem>>, vector<8x1xi32>
    %c0_10 = arith.constant 0 : index
    %c0_11 = arith.constant 0 : index
    %16 = vector.load %arg5[%c0_10, %c0_11] : memref<1x8xi32, #tpu.memory_space<vmem>>, vector<1x8xi32>
    %c0_12 = arith.constant 0 : index
    %c0_13 = arith.constant 0 : index
    %17 = vector.load %arg6[%c0_12, %c0_13] : memref<1x8xi32, #tpu.memory_space<vmem>>, vector<1x8xi32>
    %c0_14 = arith.constant 0 : index
    %c0_15 = arith.constant 0 : index
    %18 = vector.load %arg7[%c0_14, %c0_15] : memref<1x8xi32, #tpu.memory_space<vmem>>, vector<1x8xi32>
    %19 = vector.broadcast %13 : vector<8x1xi32> to vector<8x8xi32>
    %20 = vector.broadcast %16 : vector<1x8xi32> to vector<8x8xi32>
    %21 = arith.cmpi eq, %19, %20 : vector<8x8xi32>
    %22 = vector.broadcast %14 : vector<8x1xi32> to vector<8x8xi32>
    %23 = vector.broadcast %17 : vector<1x8xi32> to vector<8x8xi32>
    %24 = arith.cmpi eq, %22, %23 : vector<8x8xi32>
    %25 = vector.broadcast %15 : vector<8x1xi32> to vector<8x8xi32>
    %26 = vector.broadcast %18 : vector<1x8xi32> to vector<8x8xi32>
    %27 = arith.cmpi eq, %25, %26 : vector<8x8xi32>
    %28 = arith.extui %21 : vector<8x8xi1> to vector<8x8xi32>
    %29 = arith.sitofp %28 : vector<8x8xi32> to vector<8x8xf32>
    %30 = arith.extui %24 : vector<8x8xi1> to vector<8x8xi32>
    %31 = arith.sitofp %30 : vector<8x8xi32> to vector<8x8xf32>
    %32 = arith.extui %27 : vector<8x8xi1> to vector<8x8xi32>
    %33 = arith.sitofp %32 : vector<8x8xi32> to vector<8x8xf32>
    %34 = arith.xori %24, %21 : vector<8x8xi1>
    %35 = arith.extui %34 : vector<8x8xi1> to vector<8x8xi32>
    %36 = arith.sitofp %35 : vector<8x8xi32> to vector<8x8xf32>
    %37 = arith.xori %24, %27 : vector<8x8xi1>
    %38 = arith.extui %37 : vector<8x8xi1> to vector<8x8xi32>
    %39 = arith.sitofp %38 : vector<8x8xi32> to vector<8x8xf32>
    %cst_16 = arith.constant dense<0.000000e+00> : vector<8xf32>
    %40 = vector.multi_reduction <add>, %29, %cst_16 [1] : vector<8x8xf32> to vector<8xf32>
    %41 = vector.shape_cast %40 : vector<8xf32> to vector<8x1xf32>
    %cst_17 = arith.constant dense<0.000000e+00> : vector<8xf32>
    %42 = vector.multi_reduction <add>, %31, %cst_17 [1] : vector<8x8xf32> to vector<8xf32>
    %43 = vector.shape_cast %42 : vector<8xf32> to vector<8x1xf32>
    %cst_18 = arith.constant dense<0.000000e+00> : vector<8xf32>
    %44 = vector.multi_reduction <add>, %33, %cst_18 [1] : vector<8x8xf32> to vector<8xf32>
    %45 = vector.shape_cast %44 : vector<8xf32> to vector<8x1xf32>
    %46 = arith.mulf %12, %29 : vector<8x8xf32>
    %cst_19 = arith.constant dense<0.000000e+00> : vector<8xf32>
    %47 = vector.multi_reduction <add>, %46, %cst_19 [1] : vector<8x8xf32> to vector<8xf32>
    %48 = vector.shape_cast %47 : vector<8xf32> to vector<8x1xf32>
    %cst_20 = arith.constant 9.99999997E-7 : f32
    %49 = vector.broadcast %cst_20 : f32 to vector<8x1xf32>
    %50 = arith.maximumf %41, %49 : vector<8x1xf32>
    %51 = arith.divf %48, %50 : vector<8x1xf32>
    %52 = arith.mulf %12, %36 : vector<8x8xf32>
    %cst_21 = arith.constant dense<0.000000e+00> : vector<8xf32>
    %53 = vector.multi_reduction <add>, %52, %cst_21 [1] : vector<8x8xf32> to vector<8xf32>
    %54 = vector.shape_cast %53 : vector<8xf32> to vector<8x1xf32>
    %cst_22 = arith.constant dense<0.000000e+00> : vector<8xf32>
    %55 = vector.multi_reduction <add>, %36, %cst_22 [1] : vector<8x8xf32> to vector<8xf32>
    %56 = vector.shape_cast %55 : vector<8xf32> to vector<8x1xf32>
    %cst_23 = arith.constant 9.99999997E-7 : f32
    %57 = vector.broadcast %cst_23 : f32 to vector<8x1xf32>
    %58 = arith.maximumf %56, %57 : vector<8x1xf32>
    %59 = arith.divf %54, %58 : vector<8x1xf32>
    %60 = arith.mulf %12, %39 : vector<8x8xf32>
    %cst_24 = arith.constant dense<0.000000e+00> : vector<8xf32>
    %61 = vector.multi_reduction <add>, %60, %cst_24 [1] : vector<8x8xf32> to vector<8xf32>
    %62 = vector.shape_cast %61 : vector<8xf32> to vector<8x1xf32>
    %cst_25 = arith.constant dense<0.000000e+00> : vector<8xf32>
    %63 = vector.multi_reduction <add>, %39, %cst_25 [1] : vector<8x8xf32> to vector<8xf32>
    %64 = vector.shape_cast %63 : vector<8xf32> to vector<8x1xf32>
    %cst_26 = arith.constant 9.99999997E-7 : f32
    %65 = vector.broadcast %cst_26 : f32 to vector<8x1xf32>
    %66 = arith.maximumf %64, %65 : vector<8x1xf32>
    %67 = arith.divf %62, %66 : vector<8x1xf32>
    %68 = arith.mulf %12, %33 : vector<8x8xf32>
    %cst_27 = arith.constant dense<0.000000e+00> : vector<8xf32>
    %69 = vector.multi_reduction <add>, %68, %cst_27 [1] : vector<8x8xf32> to vector<8xf32>
    %70 = vector.shape_cast %69 : vector<8xf32> to vector<8x1xf32>
    %cst_28 = arith.constant 9.99999997E-7 : f32
    %71 = vector.broadcast %cst_28 : f32 to vector<8x1xf32>
    %72 = arith.maximumf %45, %71 : vector<8x1xf32>
    %73 = arith.divf %70, %72 : vector<8x1xf32>
    %cst_29 = arith.constant dense<0xFF800000> : vector<8xf32>
    %74 = vector.multi_reduction <maximumf>, %12, %cst_29 [1] : vector<8x8xf32> to vector<8xf32>
    %75 = vector.shape_cast %74 : vector<8xf32> to vector<8x1xf32>
    %cst_30 = arith.constant 0.000000e+00 : f32
    %76 = vector.broadcast %cst_30 : f32 to vector<8x1xf32>
    %77 = arith.maximumf %75, %76 : vector<8x1xf32>
    %78 = vector.broadcast %77 : vector<8x1xf32> to vector<8x8xf32>
    %79 = arith.subf %12, %78 : vector<8x8xf32>
    %80 = math.exp %79 : vector<8x8xf32>
    %cst_31 = arith.constant dense<0.000000e+00> : vector<8xf32>
    %81 = vector.multi_reduction <add>, %80, %cst_31 [1] : vector<8x8xf32> to vector<8xf32>
    %82 = vector.shape_cast %81 : vector<8xf32> to vector<8x1xf32>
    %cst_32 = arith.constant 0.000000e+00 : f32
    %83 = vector.broadcast %cst_32 : f32 to vector<8x1xf32>
    %84 = arith.subf %83, %77 : vector<8x1xf32>
    %85 = math.exp %84 : vector<8x1xf32>
    %86 = arith.mulf %80, %29 : vector<8x8xf32>
    %cst_33 = arith.constant dense<0.000000e+00> : vector<8xf32>
    %87 = vector.multi_reduction <add>, %86, %cst_33 [1] : vector<8x8xf32> to vector<8xf32>
    %88 = vector.shape_cast %87 : vector<8xf32> to vector<8x1xf32>
    %89 = arith.mulf %80, %31 : vector<8x8xf32>
    %cst_34 = arith.constant dense<0.000000e+00> : vector<8xf32>
    %90 = vector.multi_reduction <add>, %89, %cst_34 [1] : vector<8x8xf32> to vector<8xf32>
    %91 = vector.shape_cast %90 : vector<8xf32> to vector<8x1xf32>
    %92 = arith.mulf %80, %33 : vector<8x8xf32>
    %cst_35 = arith.constant dense<0.000000e+00> : vector<8xf32>
    %93 = vector.multi_reduction <add>, %92, %cst_35 [1] : vector<8x8xf32> to vector<8xf32>
    %94 = vector.shape_cast %93 : vector<8xf32> to vector<8x1xf32>
    %95 = arith.subf %51, %77 : vector<8x1xf32>
    %96 = math.exp %95 : vector<8x1xf32>
    %97 = arith.mulf %41, %85 : vector<8x1xf32>
    %98 = arith.addf %96, %97 : vector<8x1xf32>
    %99 = arith.subf %82, %88 : vector<8x1xf32>
    %100 = arith.addf %98, %99 : vector<8x1xf32>
    %101 = math.log %100 : vector<8x1xf32>
    %102 = arith.addf %77, %101 : vector<8x1xf32>
    %103 = arith.subf %102, %51 : vector<8x1xf32>
    %104 = arith.subf %59, %77 : vector<8x1xf32>
    %105 = math.exp %104 : vector<8x1xf32>
    %106 = arith.mulf %43, %85 : vector<8x1xf32>
    %107 = arith.addf %105, %106 : vector<8x1xf32>
    %108 = arith.subf %82, %91 : vector<8x1xf32>
    %109 = arith.addf %107, %108 : vector<8x1xf32>
    %110 = math.log %109 : vector<8x1xf32>
    %111 = arith.addf %77, %110 : vector<8x1xf32>
    %112 = arith.subf %111, %59 : vector<8x1xf32>
    %113 = arith.subf %67, %77 : vector<8x1xf32>
    %114 = math.exp %113 : vector<8x1xf32>
    %115 = arith.mulf %45, %85 : vector<8x1xf32>
    %116 = arith.addf %114, %115 : vector<8x1xf32>
    %117 = arith.subf %82, %94 : vector<8x1xf32>
    %118 = arith.addf %116, %117 : vector<8x1xf32>
    %119 = math.log %118 : vector<8x1xf32>
    %120 = arith.addf %77, %119 : vector<8x1xf32>
    %121 = arith.subf %120, %67 : vector<8x1xf32>
    %122 = arith.subf %73, %77 : vector<8x1xf32>
    %123 = math.exp %122 : vector<8x1xf32>
    %124 = arith.mulf %45, %85 : vector<8x1xf32>
    %125 = arith.addf %123, %124 : vector<8x1xf32>
    %126 = arith.subf %82, %94 : vector<8x1xf32>
    %127 = arith.addf %125, %126 : vector<8x1xf32>
    %128 = math.log %127 : vector<8x1xf32>
    %129 = arith.addf %77, %128 : vector<8x1xf32>
    %130 = arith.subf %129, %73 : vector<8x1xf32>
    %c0_i32 = arith.constant 0 : i32
    %131 = vector.broadcast %c0_i32 : i32 to vector<8x1xi32>
    %132 = arith.cmpi eq, %15, %131 : vector<8x1xi32>
    %133 = arith.extui %132 : vector<8x1xi1> to vector<8x1xi32>
    %134 = arith.sitofp %133 : vector<8x1xi32> to vector<8x1xf32>
    %c1_i32 = arith.constant 1 : i32
    %135 = vector.broadcast %c1_i32 : i32 to vector<8x1xi32>
    %136 = arith.cmpi eq, %15, %135 : vector<8x1xi32>
    %137 = arith.extui %136 : vector<8x1xi1> to vector<8x1xi32>
    %138 = arith.sitofp %137 : vector<8x1xi32> to vector<8x1xf32>
    %139 = vector.shape_cast %134 : vector<8x1xf32> to vector<1x8x1xf32>
    %cst_36 = arith.constant dense<0.000000e+00> : vector<1xf32>
    %140 = vector.multi_reduction <add>, %139, %cst_36 [1, 2] : vector<1x8x1xf32> to vector<1xf32>
    %141 = vector.shape_cast %140 : vector<1xf32> to vector<1x1x1xf32>
    %142 = vector.extract %141[0, 0, 0] : f32 from vector<1x1x1xf32>
    %143 = vector.broadcast %142 : f32 to vector<1x1xf32>
    %144 = vector.shape_cast %138 : vector<8x1xf32> to vector<1x8x1xf32>
    %cst_37 = arith.constant dense<0.000000e+00> : vector<1xf32>
    %145 = vector.multi_reduction <add>, %144, %cst_37 [1, 2] : vector<1x8x1xf32> to vector<1xf32>
    %146 = vector.shape_cast %145 : vector<1xf32> to vector<1x1x1xf32>
    %147 = vector.extract %146[0, 0, 0] : f32 from vector<1x1x1xf32>
    %148 = vector.broadcast %147 : f32 to vector<1x1xf32>
    %149 = arith.mulf %103, %134 : vector<8x1xf32>
    %150 = vector.shape_cast %149 : vector<8x1xf32> to vector<1x8x1xf32>
    %cst_38 = arith.constant dense<0.000000e+00> : vector<1xf32>
    %151 = vector.multi_reduction <add>, %150, %cst_38 [1, 2] : vector<1x8x1xf32> to vector<1xf32>
    %152 = vector.shape_cast %151 : vector<1xf32> to vector<1x1x1xf32>
    %153 = vector.extract %152[0, 0, 0] : f32 from vector<1x1x1xf32>
    %154 = vector.broadcast %153 : f32 to vector<1x1xf32>
    %cst_39 = arith.constant 0.000000e+00 : f32
    %155 = vector.broadcast %cst_39 : f32 to vector<1x1xf32>
    %156 = arith.cmpf ogt, %143, %155 : vector<1x1xf32>
    %cst_40 = arith.constant 1.000000e+00 : f32
    %157 = vector.broadcast %cst_40 : f32 to vector<1x1xf32>
    %158 = arith.maximumf %143, %157 : vector<1x1xf32>
    %159 = arith.divf %154, %158 : vector<1x1xf32>
    %cst_41 = arith.constant 0.000000e+00 : f32
    %160 = vector.broadcast %cst_41 : f32 to vector<1x1xf32>
    %161 = arith.select %156, %159, %160 : vector<1x1xi1>, vector<1x1xf32>
    %162 = arith.mulf %112, %134 : vector<8x1xf32>
    %163 = vector.shape_cast %162 : vector<8x1xf32> to vector<1x8x1xf32>
    %cst_42 = arith.constant dense<0.000000e+00> : vector<1xf32>
    %164 = vector.multi_reduction <add>, %163, %cst_42 [1, 2] : vector<1x8x1xf32> to vector<1xf32>
    %165 = vector.shape_cast %164 : vector<1xf32> to vector<1x1x1xf32>
    %166 = vector.extract %165[0, 0, 0] : f32 from vector<1x1x1xf32>
    %167 = vector.broadcast %166 : f32 to vector<1x1xf32>
    %cst_43 = arith.constant 0.000000e+00 : f32
    %168 = vector.broadcast %cst_43 : f32 to vector<1x1xf32>
    %169 = arith.cmpf ogt, %143, %168 : vector<1x1xf32>
    %cst_44 = arith.constant 1.000000e+00 : f32
    %170 = vector.broadcast %cst_44 : f32 to vector<1x1xf32>
    %171 = arith.maximumf %143, %170 : vector<1x1xf32>
    %172 = arith.divf %167, %171 : vector<1x1xf32>
    %cst_45 = arith.constant 0.000000e+00 : f32
    %173 = vector.broadcast %cst_45 : f32 to vector<1x1xf32>
    %174 = arith.select %169, %172, %173 : vector<1x1xi1>, vector<1x1xf32>
    %175 = arith.mulf %121, %134 : vector<8x1xf32>
    %176 = vector.shape_cast %175 : vector<8x1xf32> to vector<1x8x1xf32>
    %cst_46 = arith.constant dense<0.000000e+00> : vector<1xf32>
    %177 = vector.multi_reduction <add>, %176, %cst_46 [1, 2] : vector<1x8x1xf32> to vector<1xf32>
    %178 = vector.shape_cast %177 : vector<1xf32> to vector<1x1x1xf32>
    %179 = vector.extract %178[0, 0, 0] : f32 from vector<1x1x1xf32>
    %180 = vector.broadcast %179 : f32 to vector<1x1xf32>
    %cst_47 = arith.constant 0.000000e+00 : f32
    %181 = vector.broadcast %cst_47 : f32 to vector<1x1xf32>
    %182 = arith.cmpf ogt, %143, %181 : vector<1x1xf32>
    %cst_48 = arith.constant 1.000000e+00 : f32
    %183 = vector.broadcast %cst_48 : f32 to vector<1x1xf32>
    %184 = arith.maximumf %143, %183 : vector<1x1xf32>
    %185 = arith.divf %180, %184 : vector<1x1xf32>
    %cst_49 = arith.constant 0.000000e+00 : f32
    %186 = vector.broadcast %cst_49 : f32 to vector<1x1xf32>
    %187 = arith.select %182, %185, %186 : vector<1x1xi1>, vector<1x1xf32>
    %188 = arith.mulf %130, %138 : vector<8x1xf32>
    %189 = vector.shape_cast %188 : vector<8x1xf32> to vector<1x8x1xf32>
    %cst_50 = arith.constant dense<0.000000e+00> : vector<1xf32>
    %190 = vector.multi_reduction <add>, %189, %cst_50 [1, 2] : vector<1x8x1xf32> to vector<1xf32>
    %191 = vector.shape_cast %190 : vector<1xf32> to vector<1x1x1xf32>
    %192 = vector.extract %191[0, 0, 0] : f32 from vector<1x1x1xf32>
    %193 = vector.broadcast %192 : f32 to vector<1x1xf32>
    %cst_51 = arith.constant 0.000000e+00 : f32
    %194 = vector.broadcast %cst_51 : f32 to vector<1x1xf32>
    %195 = arith.cmpf ogt, %148, %194 : vector<1x1xf32>
    %cst_52 = arith.constant 1.000000e+00 : f32
    %196 = vector.broadcast %cst_52 : f32 to vector<1x1xf32>
    %197 = arith.maximumf %148, %196 : vector<1x1xf32>
    %198 = arith.divf %193, %197 : vector<1x1xf32>
    %cst_53 = arith.constant 0.000000e+00 : f32
    %199 = vector.broadcast %cst_53 : f32 to vector<1x1xf32>
    %200 = arith.select %195, %198, %199 : vector<1x1xi1>, vector<1x1xf32>
    %c0_54 = arith.constant 0 : index
    %c0_55 = arith.constant 0 : index
    %201 = vector.load %arg8[%c0_54, %c0_55] : memref<128x32xf32, #tpu.memory_space<vmem>>, vector<128x32xf32>
    %cst_56 = arith.constant dense<0.000000e+00> : vector<8x32xf32>
    %202 = tpu.matmul %0, %201, %cst_56 {dimension_numbers = #tpu.dot_dimension_numbers<[1], [0], [0], [1], [0, 0, 1, 1], [], []>} : vector<8x128xf32>, vector<128x32xf32>, vector<8x32xf32> -> vector<8x32xf32>
    %c0_57 = arith.constant 0 : index
    %c0_58 = arith.constant 0 : index
    %203 = vector.load %arg9[%c0_57, %c0_58] : memref<1x32xf32, #tpu.memory_space<vmem>>, vector<1x32xf32>
    %204 = vector.broadcast %203 : vector<1x32xf32> to vector<8x32xf32>
    %205 = arith.addf %202, %204 : vector<8x32xf32>
    %206 = math.tanh %205 : vector<8x32xf32>
    %c0_59 = arith.constant 0 : index
    %c0_60 = arith.constant 0 : index
    %207 = vector.load %arg10[%c0_59, %c0_60] : memref<32x8xf32, #tpu.memory_space<vmem>>, vector<32x8xf32>
    %cst_61 = arith.constant dense<0.000000e+00> : vector<8x8xf32>
    %208 = tpu.matmul %206, %207, %cst_61 {dimension_numbers = #tpu.dot_dimension_numbers<[1], [0], [0], [1], [0, 0, 1, 1], [], []>} : vector<8x32xf32>, vector<32x8xf32>, vector<8x8xf32> -> vector<8x8xf32>
    %c0_62 = arith.constant 0 : index
    %c0_63 = arith.constant 0 : index
    %209 = vector.load %arg11[%c0_62, %c0_63] : memref<1x8xf32, #tpu.memory_space<vmem>>, vector<1x8xf32>
    %210 = vector.broadcast %209 : vector<1x8xf32> to vector<8x8xf32>
    %211 = arith.addf %208, %210 : vector<8x8xf32>
    %212 = math.tanh %211 : vector<8x8xf32>
    %c0_64 = arith.constant 0 : index
    %c0_65 = arith.constant 0 : index
    %213 = vector.load %arg12[%c0_64, %c0_65] : memref<8x4xf32, #tpu.memory_space<vmem>>, vector<8x4xf32>
    %cst_66 = arith.constant dense<0.000000e+00> : vector<8x4xf32>
    %214 = tpu.matmul %212, %213, %cst_66 {dimension_numbers = #tpu.dot_dimension_numbers<[1], [0], [0], [1], [0, 0, 1, 1], [], []>} : vector<8x8xf32>, vector<8x4xf32>, vector<8x4xf32> -> vector<8x4xf32>
    %c0_67 = arith.constant 0 : index
    %c0_68 = arith.constant 0 : index
    %215 = vector.load %arg13[%c0_67, %c0_68] : memref<1x4xf32, #tpu.memory_space<vmem>>, vector<1x4xf32>
    %216 = vector.broadcast %215 : vector<1x4xf32> to vector<8x4xf32>
    %217 = arith.addf %214, %216 : vector<8x4xf32>
    %cst_69 = arith.constant dense<0xFF800000> : vector<8xf32>
    %218 = vector.multi_reduction <maximumf>, %217, %cst_69 [1] : vector<8x4xf32> to vector<8xf32>
    %219 = vector.shape_cast %218 : vector<8xf32> to vector<8x1xf32>
    %220 = vector.broadcast %219 : vector<8x1xf32> to vector<8x4xf32>
    %221 = arith.subf %217, %220 : vector<8x4xf32>
    %222 = math.exp %221 : vector<8x4xf32>
    %cst_70 = arith.constant dense<0.000000e+00> : vector<8xf32>
    %223 = vector.multi_reduction <add>, %222, %cst_70 [1] : vector<8x4xf32> to vector<8xf32>
    %224 = vector.shape_cast %223 : vector<8xf32> to vector<8x1xf32>
    %225 = math.log %224 : vector<8x1xf32>
    %226 = arith.addf %219, %225 : vector<8x1xf32>
    %227 = tpu.iota {dimensions = array<i32: 1>} : vector<8x4xi32>
    %228 = vector.broadcast %15 : vector<8x1xi32> to vector<8x4xi32>
    %229 = arith.cmpi eq, %227, %228 : vector<8x4xi32>
    %230 = arith.extui %229 : vector<8x4xi1> to vector<8x4xi32>
    %231 = arith.sitofp %230 : vector<8x4xi32> to vector<8x4xf32>
    %232 = arith.mulf %217, %231 : vector<8x4xf32>
    %cst_71 = arith.constant dense<0.000000e+00> : vector<8xf32>
    %233 = vector.multi_reduction <add>, %232, %cst_71 [1] : vector<8x4xf32> to vector<8xf32>
    %234 = vector.shape_cast %233 : vector<8xf32> to vector<8x1xf32>
    %235 = arith.subf %226, %234 : vector<8x1xf32>
    %236 = vector.shape_cast %235 : vector<8x1xf32> to vector<1x8x1xf32>
    %cst_72 = arith.constant dense<0.000000e+00> : vector<1xf32>
    %237 = vector.multi_reduction <add>, %236, %cst_72 [1, 2] : vector<1x8x1xf32> to vector<1xf32>
    %238 = vector.shape_cast %237 : vector<1xf32> to vector<1x1x1xf32>
    %239 = vector.extract %238[0, 0, 0] : f32 from vector<1x1x1xf32>
    %240 = vector.broadcast %239 : f32 to vector<1x1xf32>
    %cst_73 = arith.constant 1.250000e-01 : f32
    %241 = vector.broadcast %cst_73 : f32 to vector<1x1xf32>
    %242 = arith.mulf %240, %241 : vector<1x1xf32>
    %cst_74 = arith.constant 1.000000e+00 : f32
    %243 = vector.broadcast %cst_74 : f32 to vector<1x1xf32>
    %244 = arith.mulf %243, %161 : vector<1x1xf32>
    %cst_75 = arith.constant 1.000000e+00 : f32
    %245 = vector.broadcast %cst_75 : f32 to vector<1x1xf32>
    %246 = arith.mulf %245, %174 : vector<1x1xf32>
    %247 = arith.addf %244, %246 : vector<1x1xf32>
    %cst_76 = arith.constant 1.000000e+00 : f32
    %248 = vector.broadcast %cst_76 : f32 to vector<1x1xf32>
    %249 = arith.mulf %248, %187 : vector<1x1xf32>
    %250 = arith.addf %247, %249 : vector<1x1xf32>
    %cst_77 = arith.constant 3.000000e+00 : f32
    %251 = vector.broadcast %cst_77 : f32 to vector<1x1xf32>
    %252 = arith.mulf %251, %200 : vector<1x1xf32>
    %253 = arith.addf %250, %252 : vector<1x1xf32>
    %cst_78 = arith.constant 5.000000e-01 : f32
    %254 = vector.broadcast %cst_78 : f32 to vector<1x1xf32>
    %255 = arith.mulf %254, %242 : vector<1x1xf32>
    %256 = arith.addf %253, %255 : vector<1x1xf32>
    %257 = tpu.iota {dimensions = array<i32: 1>} : vector<1x8xi32>
    %cst_79 = arith.constant 0.000000e+00 : f32
    %258 = vector.broadcast %cst_79 : f32 to vector<1x8xf32>
    %c5_i32 = arith.constant 5 : i32
    %259 = vector.broadcast %c5_i32 : i32 to vector<1x8xi32>
    %260 = arith.cmpi eq, %257, %259 : vector<1x8xi32>
    %261 = vector.shape_cast %200 : vector<1x1xf32> to vector<1x1xf32>
    %262 = vector.broadcast %261 : vector<1x1xf32> to vector<1x8xf32>
    %263 = arith.select %260, %262, %258 : vector<1x8xi1>, vector<1x8xf32>
    %c4_i32 = arith.constant 4 : i32
    %264 = vector.broadcast %c4_i32 : i32 to vector<1x8xi32>
    %265 = arith.cmpi eq, %257, %264 : vector<1x8xi32>
    %266 = vector.shape_cast %242 : vector<1x1xf32> to vector<1x1xf32>
    %267 = vector.broadcast %266 : vector<1x1xf32> to vector<1x8xf32>
    %268 = arith.select %265, %267, %263 : vector<1x8xi1>, vector<1x8xf32>
    %c3_i32 = arith.constant 3 : i32
    %269 = vector.broadcast %c3_i32 : i32 to vector<1x8xi32>
    %270 = arith.cmpi eq, %257, %269 : vector<1x8xi32>
    %271 = vector.shape_cast %187 : vector<1x1xf32> to vector<1x1xf32>
    %272 = vector.broadcast %271 : vector<1x1xf32> to vector<1x8xf32>
    %273 = arith.select %270, %272, %268 : vector<1x8xi1>, vector<1x8xf32>
    %c2_i32 = arith.constant 2 : i32
    %274 = vector.broadcast %c2_i32 : i32 to vector<1x8xi32>
    %275 = arith.cmpi eq, %257, %274 : vector<1x8xi32>
    %276 = vector.shape_cast %174 : vector<1x1xf32> to vector<1x1xf32>
    %277 = vector.broadcast %276 : vector<1x1xf32> to vector<1x8xf32>
    %278 = arith.select %275, %277, %273 : vector<1x8xi1>, vector<1x8xf32>
    %c1_i32_80 = arith.constant 1 : i32
    %279 = vector.broadcast %c1_i32_80 : i32 to vector<1x8xi32>
    %280 = arith.cmpi eq, %257, %279 : vector<1x8xi32>
    %281 = vector.shape_cast %161 : vector<1x1xf32> to vector<1x1xf32>
    %282 = vector.broadcast %281 : vector<1x1xf32> to vector<1x8xf32>
    %283 = arith.select %280, %282, %278 : vector<1x8xi1>, vector<1x8xf32>
    %c0_i32_81 = arith.constant 0 : i32
    %284 = vector.broadcast %c0_i32_81 : i32 to vector<1x8xi32>
    %285 = arith.cmpi eq, %257, %284 : vector<1x8xi32>
    %286 = vector.shape_cast %256 : vector<1x1xf32> to vector<1x1xf32>
    %287 = vector.broadcast %286 : vector<1x1xf32> to vector<1x8xf32>
    %288 = arith.select %285, %287, %283 : vector<1x8xi1>, vector<1x8xf32>
    %c0_82 = arith.constant 0 : index
    %c0_83 = arith.constant 0 : index
    %289 = vector.load %arg14[%c0_82, %c0_83] : memref<1x8xf32, #tpu.memory_space<vmem>>, vector<1x8xf32>
    tpu.vector_store %arg14[%c0_82, %c0_83], %288 {strides = array<i32>} : memref<1x8xf32, #tpu.memory_space<vmem>>, vector<1x8xf32>,
    return
  }
  func.func @transform_0(%arg0: i32) -> (i32, i32) {
    %c0_i32 = arith.constant 0 : i32
    %c0_i32_0 = arith.constant 0 : i32
    %c0_i32_1 = arith.constant 0 : i32
    return %c0_i32, %c0_i32_0 : i32, i32
  }
  func.func @transform_1(%arg0: i32) -> (i32, i32) {
    %c0_i32 = arith.constant 0 : i32
    %c0_i32_0 = arith.constant 0 : i32
    %c0_i32_1 = arith.constant 0 : i32
    return %c0_i32, %c0_i32_0 : i32, i32
  }
  func.func @transform_2(%arg0: i32) -> (i32, i32) {
    %c0_i32 = arith.constant 0 : i32
    %c0_i32_0 = arith.constant 0 : i32
    %c0_i32_1 = arith.constant 0 : i32
    return %c0_i32, %c0_i32_0 : i32, i32
  }
  func.func @transform_3(%arg0: i32) -> (i32, i32) {
    %c0_i32 = arith.constant 0 : i32
    %c0_i32_0 = arith.constant 0 : i32
    %c0_i32_1 = arith.constant 0 : i32
    return %c0_i32, %c0_i32_0 : i32, i32
  }
  func.func @transform_4(%arg0: i32) -> (i32, i32) {
    %c0_i32 = arith.constant 0 : i32
    %c0_i32_0 = arith.constant 0 : i32
    %c0_i32_1 = arith.constant 0 : i32
    return %c0_i32, %c0_i32_0 : i32, i32
  }
  func.func @transform_5(%arg0: i32) -> (i32, i32) {
    %c0_i32 = arith.constant 0 : i32
    %c0_i32_0 = arith.constant 0 : i32
    %c0_i32_1 = arith.constant 0 : i32
    return %c0_i32, %c0_i32_0 : i32, i32
  }
  func.func @transform_6(%arg0: i32) -> (i32, i32) {
    %c0_i32 = arith.constant 0 : i32
    %c0_i32_0 = arith.constant 0 : i32
    %c0_i32_1 = arith.constant 0 : i32
    return %c0_i32, %c0_i32_0 : i32, i32
  }
  func.func @transform_7(%arg0: i32) -> (i32, i32) {
    %c0_i32 = arith.constant 0 : i32
    %c0_i32_0 = arith.constant 0 : i32
    %c0_i32_1 = arith.constant 0 : i32
    return %c0_i32, %c0_i32_0 : i32, i32
  }
  func.func @transform_8(%arg0: i32) -> (i32, i32) {
    %c0_i32 = arith.constant 0 : i32
    %c0_i32_0 = arith.constant 0 : i32
    %c0_i32_1 = arith.constant 0 : i32
    return %c0_i32, %c0_i32_0 : i32, i32
  }
  func.func @transform_9(%arg0: i32) -> (i32, i32) {
    %c0_i32 = arith.constant 0 : i32
    %c0_i32_0 = arith.constant 0 : i32
    %c0_i32_1 = arith.constant 0 : i32
    return %c0_i32, %c0_i32_0 : i32, i32
  }
  func.func @transform_10(%arg0: i32) -> (i32, i32) {
    %c0_i32 = arith.constant 0 : i32
    %c0_i32_0 = arith.constant 0 : i32
    %c0_i32_1 = arith.constant 0 : i32
    return %c0_i32, %c0_i32_0 : i32, i32
  }
  func.func @transform_11(%arg0: i32) -> (i32, i32) {
    %c0_i32 = arith.constant 0 : i32
    %c0_i32_0 = arith.constant 0 : i32
    %c0_i32_1 = arith.constant 0 : i32
    return %c0_i32, %c0_i32_0 : i32, i32
  }
  func.func @transform_12(%arg0: i32) -> (i32, i32) {
    %c0_i32 = arith.constant 0 : i32
    %c0_i32_0 = arith.constant 0 : i32
    %c0_i32_1 = arith.constant 0 : i32
    return %c0_i32, %c0_i32_0 : i32, i32
  }
  func.func @transform_13(%arg0: i32) -> (i32, i32) {
    %c0_i32 = arith.constant 0 : i32
    %c0_i32_0 = arith.constant 0 : i32
    %c0_i32_1 = arith.constant 0 : i32
    return %c0_i32, %c0_i32_0 : i32, i32
  }
}

</mosaic_0001>

<llo_original>
// kernel: simclr_classifier_forward.1
$region0: #{simclr_classifier_forward.1}
  #allocation0 [shape = 'u32[]', space=smem, size = 0x4, offset = 0x4, fixed_abs, tag = 'smem constant byte address 0x4 - core index']
  #allocation1 [shape = 'u32[144,128]{1,0:T(1,128)}', space=vmem, size = 0x12000, scoped, tag = 'internal scratch']
  %s0 = inlined_call_operand.vmem [shape: f32[8,128], index: 0, kind: input, shape index: {}]
  %s1 = inlined_call_operand.vmem [shape: s32[8,1], index: 1, kind: input, shape index: {}]
  %s2 = inlined_call_operand.vmem [shape: s32[8,1], index: 2, kind: input, shape index: {}]
  %s3 = inlined_call_operand.vmem [shape: s32[8,1], index: 3, kind: input, shape index: {}]
  %s4 = inlined_call_operand.vmem [shape: s32[1,8], index: 4, kind: input, shape index: {}]
  %s5 = inlined_call_operand.vmem [shape: s32[1,8], index: 5, kind: input, shape index: {}]
  %s6 = inlined_call_operand.vmem [shape: s32[1,8], index: 6, kind: input, shape index: {}]
  %s7 = inlined_call_operand.vmem [shape: f32[128,32], index: 7, kind: input, shape index: {}]
  %s8 = inlined_call_operand.vmem [shape: f32[1,32], index: 8, kind: input, shape index: {}]
  %s9 = inlined_call_operand.vmem [shape: f32[32,8], index: 9, kind: input, shape index: {}]
  %s10 = inlined_call_operand.vmem [shape: f32[1,8], index: 10, kind: input, shape index: {}]
  %s11 = inlined_call_operand.vmem [shape: f32[8,4], index: 11, kind: input, shape index: {}]
  %s12 = inlined_call_operand.vmem [shape: f32[1,4], index: 12, kind: input, shape index: {}]
  %s13 = inlined_call_operand.vmem [shape: f32[1,8], index: 13, kind: output, shape index: {}]
  %s14 = sld [smem:[#allocation0]]
  $region62: #{simclr_classifier_forward.1} parent=0
    _
  %s16 = ssub.s32 1, %s14
  %s17 = scalar_select 0, %s16, %s14
  // Predicated region
  $region2: #{simclr_classifier_forward.1} parent=0 // pred_check
    _
  $region3: #{simclr_classifier_forward.1} parent=0 // pred_check_branch
    %19 = sbr.rel (0) target = $region5
  $region4: #{simclr_classifier_forward.1} parent=0 // pred_region
    _
  $region5: #{simclr_classifier_forward.1} parent=0 // pred_fallthru
    _
  // Predicated region
  $region6: #{simclr_classifier_forward.1} parent=0 // pred_check
    _
  $region7: #{simclr_classifier_forward.1} parent=0 // pred_check_branch
    %21 = sbr.rel (0) target = $region9
  $region8: #{simclr_classifier_forward.1} parent=0 // pred_region
    _
  $region9: #{simclr_classifier_forward.1} parent=0 // pred_fallthru
    _
  // Predicated region
  $region10: #{simclr_classifier_forward.1} parent=0 // pred_check
    _
  $region11: #{simclr_classifier_forward.1} parent=0 // pred_check_branch
    %23 = sbr.rel (0) target = $region13
  $region12: #{simclr_classifier_forward.1} parent=0 // pred_region
    _
  $region13: #{simclr_classifier_forward.1} parent=0 // pred_fallthru
    _
  // Predicated region
  $region14: #{simclr_classifier_forward.1} parent=0 // pred_check
    _
  $region15: #{simclr_classifier_forward.1} parent=0 // pred_check_branch
    %25 = sbr.rel (0) target = $region17
  $region16: #{simclr_classifier_forward.1} parent=0 // pred_region
    _
  $region17: #{simclr_classifier_forward.1} parent=0 // pred_fallthru
    _
  // Predicated region
  $region18: #{simclr_classifier_forward.1} parent=0 // pred_check
    _
  $region19: #{simclr_classifier_forward.1} parent=0 // pred_check_branch
    %27 = sbr.rel (0) target = $region21
  $region20: #{simclr_classifier_forward.1} parent=0 // pred_region
    _
  $region21: #{simclr_classifier_forward.1} parent=0 // pred_fallthru
    _
  // Predicated region
  $region22: #{simclr_classifier_forward.1} parent=0 // pred_check
    _
  $region23: #{simclr_classifier_forward.1} parent=0 // pred_check_branch
    %29 = sbr.rel (0) target = $region25
  $region24: #{simclr_classifier_forward.1} parent=0 // pred_region
    _
  $region25: #{simclr_classifier_forward.1} parent=0 // pred_fallthru
    _
  // Predicated region
  $region26: #{simclr_classifier_forward.1} parent=0 // pred_check
    _
  $region27: #{simclr_classifier_forward.1} parent=0 // pred_check_branch
    %31 = sbr.rel (0) target = $region29
  $region28: #{simclr_classifier_forward.1} parent=0 // pred_region
    _
  $region29: #{simclr_classifier_forward.1} parent=0 // pred_fallthru
    _
  // Predicated region
  $region30: #{simclr_classifier_forward.1} parent=0 // pred_check
    _
  $region31: #{simclr_classifier_forward.1} parent=0 // pred_check_branch
    %33 = sbr.rel (0) target = $region33
  $region32: #{simclr_classifier_forward.1} parent=0 // pred_region
    _
  $region33: #{simclr_classifier_forward.1} parent=0 // pred_fallthru
    _
  // Predicated region
  $region34: #{simclr_classifier_forward.1} parent=0 // pred_check
    _
  $region35: #{simclr_classifier_forward.1} parent=0 // pred_check_branch
    %35 = sbr.rel (0) target = $region37
  $region36: #{simclr_classifier_forward.1} parent=0 // pred_region
    _
  $region37: #{simclr_classifier_forward.1} parent=0 // pred_fallthru
    _
  // Predicated region
  $region38: #{simclr_classifier_forward.1} parent=0 // pred_check
    _
  $region39: #{simclr_classifier_forward.1} parent=0 // pred_check_branch
    %37 = sbr.rel (0) target = $region41
  $region40: #{simclr_classifier_forward.1} parent=0 // pred_region
    _
  $region41: #{simclr_classifier_forward.1} parent=0 // pred_fallthru
    _
  // Predicated region
  $region42: #{simclr_classifier_forward.1} parent=0 // pred_check
    _
  $region43: #{simclr_classifier_forward.1} parent=0 // pred_check_branch
    %39 = sbr.rel (0) target = $region45
  $region44: #{simclr_classifier_forward.1} parent=0 // pred_region
    _
  $region45: #{simclr_classifier_forward.1} parent=0 // pred_fallthru
    _
  // Predicated region
  $region46: #{simclr_classifier_forward.1} parent=0 // pred_check
    _
  $region47: #{simclr_classifier_forward.1} parent=0 // pred_check_branch
    %41 = sbr.rel (0) target = $region49
  $region48: #{simclr_classifier_forward.1} parent=0 // pred_region
    _
  $region49: #{simclr_classifier_forward.1} parent=0 // pred_fallthru
    _
  // Predicated region
  $region50: #{simclr_classifier_forward.1} parent=0 // pred_check
    _
  $region51: #{simclr_classifier_forward.1} parent=0 // pred_check_branch
    %43 = sbr.rel (0) target = $region53
  $region52: #{simclr_classifier_forward.1} parent=0 // pred_region
    _
  $region53: #{simclr_classifier_forward.1} parent=0 // pred_fallthru
    _
  %v45 = vld [vmem:[%s0] sm:$0xff]
  %v46 = vmul.f32 %v45, %v45
  %47 = vadd.xlane.f32.xlu0 %v46
  %v48 = vpop.xlane.xlu0 %47
  %v49 = vmax.f32 %v48, 1e-24
  %v50 = vrsqrt.pop %v49
  %v51 = vmul.f32 %v45, %v50
  %v52 = vpack.c.bf16 %v51, %v51
  %53 = vmatprep.subr.bf16.mxu0 0
  %54 = vmatpush1.bf16.xpose.msra.mxu0 %v52
  %55 = vmatprep.subr.bf16.mxu0 0
  %56 = vmatpush1.bf16.xpose.msra.mxu0 0
  %57 = vmatprep.subr.bf16.mxu0 0
  %58 = vmatpush1.bf16.xpose.msra.mxu0 0
  %59 = vmatprep.subr.bf16.mxu0 0
  %60 = vmatpush1.bf16.xpose.msra.mxu0 0
  %61 = vmatprep.subr.bf16.mxu0 0
  %62 = vmatpush1.bf16.xpose.msra.mxu0 0
  %63 = vmatprep.subr.bf16.mxu0 0
  %64 = vmatpush1.bf16.xpose.msra.mxu0 0
  %65 = vmatprep.subr.bf16.mxu0 0
  %66 = vmatpush1.bf16.xpose.msra.mxu0 0
  %67 = vmatprep.subr.bf16.mxu0 0
  %68 = vmatpush1.bf16.xpose.msra.mxu0 0
  %69 = vmatprep.subr.bf16.mxu0 0
  %70 = vmatpush1.bf16.xpose.msra.mxu0 0
  %71 = vmatprep.subr.bf16.mxu0 0
  %72 = vmatpush1.bf16.xpose.msra.mxu0 0
  %73 = vmatprep.subr.bf16.mxu0 0
  %74 = vmatpush1.bf16.xpose.msra.mxu0 0
  %75 = vmatprep.subr.bf16.mxu0 0
  %76 = vmatpush1.bf16.xpose.msra.mxu0 0
  %77 = vmatprep.subr.bf16.mxu0 0
  %78 = vmatpush1.bf16.xpose.msra.mxu0 0
  %79 = vmatprep.subr.bf16.mxu0 0
  %80 = vmatpush1.bf16.xpose.msra.mxu0 0
  %81 = vmatprep.subr.bf16.mxu0 0
  %82 = vmatpush1.bf16.xpose.msra.mxu0 0
  %83 = vmatprep.subr.bf16.mxu0 0
  %84 = vmatpush1.bf16.xpose.msra.mxu0 0
  %85 = vmatprep.mubr.bf16.mxu0 0
  %86 = vmatmul.mubr.bf16.gmra.mrb[0].mxu0 %v52
  %v87 = vpop.f32.mrb[0].mxu0
  %v88 = vadd.f32 0.0, %v87
  %v89 = vpop.f32.mrb[0].mxu0
  %v90 = vpop.f32.mrb[0].mxu0
  %v91 = vpop.f32.mrb[0].mxu0
  %92 = vdwg.mxu0
  %v93 = vmul.f32 %v88, 14.285714
  %v94 = vld [vmem:[%s1] sm:$0xff]
  %v95 = vld [vmem:[%s2] sm:$0xff]
  %v96 = vld [vmem:[%s3] sm:$0xff]
  %v97 = vld [vmem:[%s4] sm:$0x1]
  %v98 = vld [vmem:[%s5] sm:$0x1]
  %v99 = vld [vmem:[%s6] sm:$0x1]
  %100 = vset.pattern.permute.xlu0 0
  %101 = vperm.xlu0 %100, %v94
  %v102 = vpop.permute.xlu0 %101
  %v103 = vlaneseq
  %v104 = vshrl.u32 %v103, 7
  %v105 = vsub.s32 0, %v104
  %v106 = vrot.slane %v97, %v105
  %vm107 = vcmp.eq.s32.totalorder %v102, %v106
  %108 = vset.pattern.permute.xlu0 0
  %109 = vperm.xlu0 %108, %v95
  %v110 = vpop.permute.xlu0 %109
  %v111 = vlaneseq
  %v112 = vshrl.u32 %v111, 7
  %v113 = vsub.s32 0, %v112
  %v114 = vrot.slane %v98, %v113
  %vm115 = vcmp.eq.s32.totalorder %v110, %v114
  %116 = vset.pattern.permute.xlu0 0
  %117 = vperm.xlu0 %116, %v96
  %v118 = vpop.permute.xlu0 %117
  %v119 = vlaneseq
  %v120 = vshrl.u32 %v119, 7
  %v121 = vsub.s32 0, %v120
  %v122 = vrot.slane %v99, %v121
  %vm123 = vcmp.eq.s32.totalorder %v118, %v122
  %v124 = vsel %vm107, 1, 0
  %v125 = vcvt.s32.f32 %v124
  %v126 = vsel %vm115, 1, 0
  %v127 = vcvt.s32.f32 %v126
  %v128 = vsel %vm123, 1, 0
  %v129 = vcvt.s32.f32 %v128
  %vm130 = vmxor %vm115, %vm107
  %v131 = vsel %vm130, 1, 0
  %v132 = vcvt.s32.f32 %v131
  %vm133 = vmxor %vm115, %vm123
  %v134 = vsel %vm133, 1, 0
  %v135 = vcvt.s32.f32 %v134
  %vm136 = vcmask 64512
  %v137 = vsel %vm136, %v125, 0.0
  %138 = vadd.xlane.f32.xlu0 %v137
  %v139 = vpop.xlane.xlu0 %138
  %v140 = vsel %vm136, %v127, 0.0
  %141 = vadd.xlane.f32.xlu0 %v140
  %v142 = vpop.xlane.xlu0 %141
  %v143 = vsel %vm136, %v129, 0.0
  %144 = vadd.xlane.f32.xlu0 %v143
  %v145 = vpop.xlane.xlu0 %144
  %v146 = vmul.f32 %v93, %v125
  %v147 = vsel %vm136, %v146, 0.0
  %148 = vadd.xlane.f32.xlu0 %v147
  %v149 = vpop.xlane.xlu0 %148
  %v150 = vmax.f32 %v139, 1e-06
  %v151 = vrcp.pop %v150
  %v152 = vmul.f32 %v149, %v151
  %v153 = vmul.f32 %v93, %v132
  %v154 = vsel %vm136, %v153, 0.0
  %155 = vadd.xlane.f32.xlu0 %v154
  %v156 = vpop.xlane.xlu0 %155
  %v157 = vsel %vm136, %v132, 0.0
  %158 = vadd.xlane.f32.xlu0 %v157
  %v159 = vpop.xlane.xlu0 %158
  %v160 = vmax.f32 %v159, 1e-06
  %v161 = vrcp.pop %v160
  %v162 = vmul.f32 %v156, %v161
  %v163 = vmul.f32 %v93, %v135
  %v164 = vsel %vm136, %v163, 0.0
  %165 = vadd.xlane.f32.xlu0 %v164
  %v166 = vpop.xlane.xlu0 %165
  %v167 = vsel %vm136, %v135, 0.0
  %168 = vadd.xlane.f32.xlu0 %v167
  %v169 = vpop.xlane.xlu0 %168
  %v170 = vmax.f32 %v169, 1e-06
  %v171 = vrcp.pop %v170
  %v172 = vmul.f32 %v166, %v171
  %v173 = vmul.f32 %v93, %v129
  %v174 = vsel %vm136, %v173, 0.0
  %175 = vadd.xlane.f32.xlu0 %v174
  %v176 = vpop.xlane.xlu0 %175
  %v177 = vmax.f32 %v145, 1e-06
  %v178 = vrcp.pop %v177
  %v179 = vmul.f32 %v176, %v178
  %v180 = vsel %vm136, %v93, -inf
  %181 = vmax.xlane.f32.xlu0 %v180
  %v182 = vpop.xlane.xlu0 %181
  %v183 = vmax.f32 %v182, 0.0
  %v184 = vsub.f32 %v93, %v183
  %v185 = vmul.f32 %v184, 1.442695
  %v186 = vpow.pop %v185
  %v187 = vsel %vm136, %v186, 0.0
  %188 = vadd.xlane.f32.xlu0 %v187
  %v189 = vpop.xlane.xlu0 %188
  %v190 = vsub.f32 0.0, %v183
  %v191 = vmul.f32 %v190, 1.442695
  %v192 = vpow.pop %v191
  %v193 = vmul.f32 %v186, %v125
  %v194 = vsel %vm136, %v193, 0.0
  %195 = vadd.xlane.f32.xlu0 %v194
  %v196 = vpop.xlane.xlu0 %195
  %v197 = vmul.f32 %v186, %v127
  %v198 = vsel %vm136, %v197, 0.0
  %199 = vadd.xlane.f32.xlu0 %v198
  %v200 = vpop.xlane.xlu0 %199
  %v201 = vmul.f32 %v186, %v129
  %v202 = vsel %vm136, %v201, 0.0
  %203 = vadd.xlane.f32.xlu0 %v202
  %v204 = vpop.xlane.xlu0 %203
  %v205 = vsub.f32 %v152, %v183
  %v206 = vmul.f32 %v205, 1.442695
  %v207 = vpow.pop %v206
  %v208 = vmul.f32 %v139, %v192
  %v209 = vadd.f32 %v207, %v208
  %v210 = vsub.f32 %v189, %v196
  %v211 = vadd.f32 %v209, %v210
  %v212 = vlog2.pop %v211
  %v213 = vmul.f32 %v212, 0.6931472
  %v214 = vadd.f32 %v183, %v213
  %v215 = vsub.f32 %v214, %v152
  %v216 = vsub.f32 %v162, %v183
  %v217 = vmul.f32 %v216, 1.442695
  %v218 = vpow.pop %v217
  %v219 = vmul.f32 %v142, %v192
  %v220 = vadd.f32 %v218, %v219
  %v221 = vsub.f32 %v189, %v200
  %v222 = vadd.f32 %v220, %v221
  %v223 = vlog2.pop %v222
  %v224 = vmul.f32 %v223, 0.6931472
  %v225 = vadd.f32 %v183, %v224
  %v226 = vsub.f32 %v225, %v162
  %v227 = vsub.f32 %v172, %v183
  %v228 = vmul.f32 %v227, 1.442695
  %v229 = vpow.pop %v228
  %v230 = vmul.f32 %v145, %v192
  %v231 = vadd.f32 %v229, %v230
  %v232 = vsub.f32 %v189, %v204
  %v233 = vadd.f32 %v231, %v232
  %v234 = vlog2.pop %v233
  %v235 = vmul.f32 %v234, 0.6931472
  %v236 = vadd.f32 %v183, %v235
  %v237 = vsub.f32 %v236, %v172
  %v238 = vsub.f32 %v179, %v183
  %v239 = vmul.f32 %v238, 1.442695
  %v240 = vpow.pop %v239
  %v241 = vadd.f32 %v240, %v230
  %v242 = vadd.f32 %v241, %v232
  %v243 = vlog2.pop %v242
  %v244 = vmul.f32 %v243, 0.6931472
  %v245 = vadd.f32 %v183, %v244
  %v246 = vsub.f32 %v245, %v179
  %vm247 = vcmp.eq.s32.totalorder %v96, 0
  %v248 = vsel %vm247, 1, 0
  %v249 = vcvt.s32.f32 %v248
  %vm250 = vcmp.eq.s32.totalorder %v96, 1
  %v251 = vsel %vm250, 1, 0
  %v252 = vcvt.s32.f32 %v251
  %vm253 = vcmask 7168
  %v254 = vsel %vm253, %v249, 0.0
  %255 = vadd.xlane.f32.xlu0 %v254
  %v256 = vpop.xlane.xlu0 %255
  %v257 = vrot.slane %v256, 4
  %v258 = vadd.f32 %v256, %v257
  %v259 = vrot.slane %v258, 2
  %v260 = vadd.f32 %v258, %v259
  %v261 = vrot.slane %v260, 1
  %v262 = vadd.f32 %v260, %v261
  %s263 = vtos %v262
  %v264 = vstv %s263
  %v265 = vsel %vm253, %v252, 0.0
  %266 = vadd.xlane.f32.xlu0 %v265
  %v267 = vpop.xlane.xlu0 %266
  %v268 = vrot.slane %v267, 4
  %v269 = vadd.f32 %v267, %v268
  %v270 = vrot.slane %v269, 2
  %v271 = vadd.f32 %v269, %v270
  %v272 = vrot.slane %v271, 1
  %v273 = vadd.f32 %v271, %v272
  %s274 = vtos %v273
  %v275 = vstv %s274
  %v276 = vmul.f32 %v215, %v249
  %v277 = vsel %vm253, %v276, 0.0
  %278 = vadd.xlane.f32.xlu0 %v277
  %v279 = vpop.xlane.xlu0 %278
  %v280 = vrot.slane %v279, 4
  %v281 = vadd.f32 %v279, %v280
  %v282 = vrot.slane %v281, 2
  %v283 = vadd.f32 %v281, %v282
  %v284 = vrot.slane %v283, 1
  %v285 = vadd.f32 %v283, %v284
  %s286 = vtos %v285
  %v287 = vstv %s286
  %vm288 = vcmp.gt.f32.partialorder %v264, 0.0
  %v289 = vmax.f32 %v264, 1.0
  %v290 = vrcp.pop %v289
  %v291 = vmul.f32 %v287, %v290
  %v292 = vsel %vm288, %v291, 0.0
  %v293 = vmul.f32 %v226, %v249
  %v294 = vsel %vm253, %v293, 0.0
  %295 = vadd.xlane.f32.xlu0 %v294
  %v296 = vpop.xlane.xlu0 %295
  %v297 = vrot.slane %v296, 4
  %v298 = vadd.f32 %v296, %v297
  %v299 = vrot.slane %v298, 2
  %v300 = vadd.f32 %v298, %v299
  %v301 = vrot.slane %v300, 1
  %v302 = vadd.f32 %v300, %v301
  %s303 = vtos %v302
  %v304 = vstv %s303
  %v305 = vmul.f32 %v304, %v290
  %v306 = vsel %vm288, %v305, 0.0
  %v307 = vmul.f32 %v237, %v249
  %v308 = vsel %vm253, %v307, 0.0
  %309 = vadd.xlane.f32.xlu0 %v308
  %v310 = vpop.xlane.xlu0 %309
  %v311 = vrot.slane %v310, 4
  %v312 = vadd.f32 %v310, %v311
  %v313 = vrot.slane %v312, 2
  %v314 = vadd.f32 %v312, %v313
  %v315 = vrot.slane %v314, 1
  %v316 = vadd.f32 %v314, %v315
  %s317 = vtos %v316
  %v318 = vstv %s317
  %v319 = vmul.f32 %v318, %v290
  %v320 = vsel %vm288, %v319, 0.0
  %v321 = vmul.f32 %v246, %v252
  %v322 = vsel %vm253, %v321, 0.0
  %323 = vadd.xlane.f32.xlu0 %v322
  %v324 = vpop.xlane.xlu0 %323
  %v325 = vrot.slane %v324, 4
  %v326 = vadd.f32 %v324, %v325
  %v327 = vrot.slane %v326, 2
  %v328 = vadd.f32 %v326, %v327
  %v329 = vrot.slane %v328, 1
  %v330 = vadd.f32 %v328, %v329
  %s331 = vtos %v330
  %v332 = vstv %s331
  %vm333 = vcmp.gt.f32.partialorder %v275, 0.0
  %v334 = vmax.f32 %v275, 1.0
  %v335 = vrcp.pop %v334
  %v336 = vmul.f32 %v332, %v335
  %v337 = vsel %vm333, %v336, 0.0
  %v338 = vld [vmem:[%s7] sm:$0xff]
  %v339 = vld [vmem:[%s7 + $0x8] sm:$0xff]
  %v340 = vld [vmem:[%s7 + $0x10] sm:$0xff]
  %v341 = vld [vmem:[%s7 + $0x18] sm:$0xff]
  %v342 = vld [vmem:[%s7 + $0x20] sm:$0xff]
  %v343 = vld [vmem:[%s7 + $0x28] sm:$0xff]
  %v344 = vld [vmem:[%s7 + $0x30] sm:$0xff]
  %v345 = vld [vmem:[%s7 + $0x38] sm:$0xff]
  %v346 = vld [vmem:[%s7 + $0x40] sm:$0xff]
  %v347 = vld [vmem:[%s7 + $0x48] sm:$0xff]
  %v348 = vld [vmem:[%s7 + $0x50] sm:$0xff]
  %v349 = vld [vmem:[%s7 + $0x58] sm:$0xff]
  %v350 = vld [vmem:[%s7 + $0x60] sm:$0xff]
  %v351 = vld [vmem:[%s7 + $0x68] sm:$0xff]
  %v352 = vld [vmem:[%s7 + $0x70] sm:$0xff]
  %v353 = vld [vmem:[%s7 + $0x78] sm:$0xff]
  %v354 = vld [vmem:[%s8] sm:$0x1]
  %v356 = vlaneseq
  %v357 = vshrl.u32 %v356, 7
  %v358 = vsub.s32 0, %v357
  %v359 = vrot.slane %v354, %v358
  %361 = vmatprep.subr.mxu0 0.0
  %362 = vmatpush1.msra.mxu0 %v338
  %363 = vmatprep.subr.mxu0 0.0
  %364 = vmatpush1.msra.mxu0 %v339
  %365 = vmatprep.subr.mxu0 0.0
  %366 = vmatpush1.msra.mxu0 %v340
  %367 = vmatprep.subr.mxu0 0.0
  %368 = vmatpush1.msra.mxu0 %v341
  %369 = vmatprep.subr.mxu0 0.0
  %370 = vmatpush1.msra.mxu0 %v342
  %371 = vmatprep.subr.mxu0 0.0
  %372 = vmatpush1.msra.mxu0 %v343
  %373 = vmatprep.subr.mxu0 0.0
  %374 = vmatpush1.msra.mxu0 %v344
  %375 = vmatprep.subr.mxu0 0.0
  %376 = vmatpush1.msra.mxu0 %v345
  %377 = vmatprep.subr.mxu0 0.0
  %378 = vmatpush1.msra.mxu0 %v346
  %379 = vmatprep.subr.mxu0 0.0
  %380 = vmatpush1.msra.mxu0 %v347
  %381 = vmatprep.subr.mxu0 0.0
  %382 = vmatpush1.msra.mxu0 %v348
  %383 = vmatprep.subr.mxu0 0.0
  %384 = vmatpush1.msra.mxu0 %v349
  %385 = vmatprep.subr.mxu0 0.0
  %386 = vmatpush1.msra.mxu0 %v350
  %387 = vmatprep.subr.mxu0 0.0
  %388 = vmatpush1.msra.mxu0 %v351
  %389 = vmatprep.subr.mxu0 0.0
  %390 = vmatpush1.msra.mxu0 %v352
  %391 = vmatprep.subr.mxu0 0.0
  %392 = vmatpush1.msra.mxu0 %v353
  %393 = vmatprep.subr.mxu0 0.0
  %394 = vmatpush1.msra.mxu0 0.0
  %395 = vmatprep.subr.mxu0 0.0
  %396 = vmatpush1.msra.mxu0 0.0
  %397 = vmatprep.subr.mxu0 0.0
  %398 = vmatpush1.msra.mxu0 0.0
  %399 = vmatprep.subr.mxu0 0.0
  %400 = vmatpush1.msra.mxu0 0.0
  %401 = vmatprep.subr.mxu0 0.0
  %402 = vmatpush1.msra.mxu0 0.0
  %403 = vmatprep.subr.mxu0 0.0
  %404 = vmatpush1.msra.mxu0 0.0
  %405 = vmatprep.subr.mxu0 0.0
  %406 = vmatpush1.msra.mxu0 0.0
  %407 = vmatprep.subr.mxu0 0.0
  %408 = vmatpush1.msra.mxu0 0.0
  %409 = vmatprep.subr.mxu0 0.0
  %410 = vmatpush1.msra.mxu0 0.0
  %411 = vmatprep.subr.mxu0 0.0
  %412 = vmatpush1.msra.mxu0 0.0
  %413 = vmatprep.subr.mxu0 0.0
  %414 = vmatpush1.msra.mxu0 0.0
  %415 = vmatprep.subr.mxu0 0.0
  %416 = vmatpush1.msra.mxu0 0.0
  %417 = vmatprep.subr.mxu0 0.0
  %418 = vmatpush1.msra.mxu0 0.0
  %419 = vmatprep.subr.mxu0 0.0
  %420 = vmatpush1.msra.mxu0 0.0
  %421 = vmatprep.subr.mxu0 0.0
  %422 = vmatpush1.msra.mxu0 0.0
  %423 = vmatprep.subr.mxu0 0.0
  %424 = vmatpush1.msra.mxu0 0.0
  %425 = vmatprep.mubr.f32.mxu0 0.0
  %426 = vmatmul.mubr.f32.gmra.mrb[0].mxu0 %v45
  %v427 = vpop.f32.mrb[0].mxu0
  %v428 = vadd.f32 %v359, %v427
  %v429 = vpop.f32.mrb[0].mxu0
  %430 = vdwg.mxu0
  %v431 = vtanh.pop %v428
  %v432 = vld [vmem:[%s9] sm:$0xff]
  %v433 = vld [vmem:[%s9 + $0x8] sm:$0xff]
  %v434 = vld [vmem:[%s9 + $0x10] sm:$0xff]
  %v435 = vld [vmem:[%s9 + $0x18] sm:$0xff]
  %v436 = vld [vmem:[%s10] sm:$0x1]
  %v438 = vlaneseq
  %v439 = vshrl.u32 %v438, 7
  %v440 = vsub.s32 0, %v439
  %v441 = vrot.slane %v436, %v440
  %vm443 = vcmask 261120
  %v445 = vsel %vm443, %v431, 0
  %447 = vmatprep.subr.mxu0 0.0
  %448 = vmatpush1.msra.mxu0 %v432
  %449 = vmatprep.subr.mxu0 0.0
  %450 = vmatpush1.msra.mxu0 %v433
  %451 = vmatprep.subr.mxu0 0.0
  %452 = vmatpush1.msra.mxu0 %v434
  %453 = vmatprep.subr.mxu0 0.0
  %454 = vmatpush1.msra.mxu0 %v435
  %455 = vmatprep.subr.mxu0 0.0
  %456 = vmatpush1.msra.mxu0 0.0
  %457 = vmatprep.subr.mxu0 0.0
  %458 = vmatpush1.msra.mxu0 0.0
  %459 = vmatprep.subr.mxu0 0.0
  %460 = vmatpush1.msra.mxu0 0.0
  %461 = vmatprep.subr.mxu0 0.0
  %462 = vmatpush1.msra.mxu0 0.0
  %463 = vmatprep.subr.mxu0 0.0
  %464 = vmatpush1.msra.mxu0 0.0
  %465 = vmatprep.subr.mxu0 0.0
  %466 = vmatpush1.msra.mxu0 0.0
  %467 = vmatprep.subr.mxu0 0.0
  %468 = vmatpush1.msra.mxu0 0.0
  %469 = vmatprep.subr.mxu0 0.0
  %470 = vmatpush1.msra.mxu0 0.0
  %471 = vmatprep.subr.mxu0 0.0
  %472 = vmatpush1.msra.mxu0 0.0
  %473 = vmatprep.subr.mxu0 0.0
  %474 = vmatpush1.msra.mxu0 0.0
  %475 = vmatprep.subr.mxu0 0.0
  %476 = vmatpush1.msra.mxu0 0.0
  %477 = vmatprep.subr.mxu0 0.0
  %478 = vmatpush1.msra.mxu0 0.0
  %479 = vmatprep.subr.mxu0 0.0
  %480 = vmatpush1.msra.mxu0 0.0
  %481 = vmatprep.subr.mxu0 0.0
  %482 = vmatpush1.msra.mxu0 0.0
  %483 = vmatprep.subr.mxu0 0.0
  %484 = vmatpush1.msra.mxu0 0.0
  %485 = vmatprep.subr.mxu0 0.0
  %486 = vmatpush1.msra.mxu0 0.0
  %487 = vmatprep.subr.mxu0 0.0
  %488 = vmatpush1.msra.mxu0 0.0
  %489 = vmatprep.subr.mxu0 0.0
  %490 = vmatpush1.msra.mxu0 0.0
  %491 = vmatprep.subr.mxu0 0.0
  %492 = vmatpush1.msra.mxu0 0.0
  %493 = vmatprep.subr.mxu0 0.0
  %494 = vmatpush1.msra.mxu0 0.0
  %495 = vmatprep.subr.mxu0 0.0
  %496 = vmatpush1.msra.mxu0 0.0
  %497 = vmatprep.subr.mxu0 0.0
  %498 = vmatpush1.msra.mxu0 0.0
  %499 = vmatprep.subr.mxu0 0.0
  %500 = vmatpush1.msra.mxu0 0.0
  %501 = vmatprep.subr.mxu0 0.0
  %502 = vmatpush1.msra.mxu0 0.0
  %503 = vmatprep.subr.mxu0 0.0
  %504 = vmatpush1.msra.mxu0 0.0
  %505 = vmatprep.subr.mxu0 0.0
  %506 = vmatpush1.msra.mxu0 0.0
  %507 = vmatprep.subr.mxu0 0.0
  %508 = vmatpush1.msra.mxu0 0.0
  %509 = vmatprep.subr.mxu0 0.0
  %510 = vmatpush1.msra.mxu0 0.0
  %511 = vmatprep.mubr.f32.mxu0 0.0
  %512 = vmatmul.mubr.f32.gmra.mrb[0].mxu0 %v445
  %v513 = vpop.f32.mrb[0].mxu0
  %v514 = vadd.f32 %v441, %v513
  %v515 = vpop.f32.mrb[0].mxu0
  %516 = vdwg.mxu0
  %v517 = vtanh.pop %v514
  %v518 = vld [vmem:[%s11] sm:$0xff]
  %v519 = vld [vmem:[%s12] sm:$0x1]
  %v521 = vlaneseq
  %v522 = vshrl.u32 %v521, 7
  %v523 = vsub.s32 0, %v522
  %v524 = vrot.slane %v519, %v523
  %v527 = vsel %vm136, %v517, 0
  %529 = vmatprep.subr.mxu0 0.0
  %530 = vmatpush1.msra.mxu0 %v518
  %531 = vmatprep.subr.mxu0 0.0
  %532 = vmatpush1.msra.mxu0 0.0
  %533 = vmatprep.subr.mxu0 0.0
  %534 = vmatpush1.msra.mxu0 0.0
  %535 = vmatprep.subr.mxu0 0.0
  %536 = vmatpush1.msra.mxu0 0.0
  %537 = vmatprep.subr.mxu0 0.0
  %538 = vmatpush1.msra.mxu0 0.0
  %539 = vmatprep.subr.mxu0 0.0
  %540 = vmatpush1.msra.mxu0 0.0
  %541 = vmatprep.subr.mxu0 0.0
  %542 = vmatpush1.msra.mxu0 0.0
  %543 = vmatprep.subr.mxu0 0.0
  %544 = vmatpush1.msra.mxu0 0.0
  %545 = vmatprep.subr.mxu0 0.0
  %546 = vmatpush1.msra.mxu0 0.0
  %547 = vmatprep.subr.mxu0 0.0
  %548 = vmatpush1.msra.mxu0 0.0
  %549 = vmatprep.subr.mxu0 0.0
  %550 = vmatpush1.msra.mxu0 0.0
  %551 = vmatprep.subr.mxu0 0.0
  %552 = vmatpush1.msra.mxu0 0.0
  %553 = vmatprep.subr.mxu0 0.0
  %554 = vmatpush1.msra.mxu0 0.0
  %555 = vmatprep.subr.mxu0 0.0
  %556 = vmatpush1.msra.mxu0 0.0
  %557 = vmatprep.subr.mxu0 0.0
  %558 = vmatpush1.msra.mxu0 0.0
  %559 = vmatprep.subr.mxu0 0.0
  %560 = vmatpush1.msra.mxu0 0.0
  %561 = vmatprep.subr.mxu0 0.0
  %562 = vmatpush1.msra.mxu0 0.0
  %563 = vmatprep.subr.mxu0 0.0
  %564 = vmatpush1.msra.mxu0 0.0
  %565 = vmatprep.subr.mxu0 0.0
  %566 = vmatpush1.msra.mxu0 0.0
  %567 = vmatprep.subr.mxu0 0.0
  %568 = vmatpush1.msra.mxu0 0.0
  %569 = vmatprep.subr.mxu0 0.0
  %570 = vmatpush1.msra.mxu0 0.0
  %571 = vmatprep.subr.mxu0 0.0
  %572 = vmatpush1.msra.mxu0 0.0
  %573 = vmatprep.subr.mxu0 0.0
  %574 = vmatpush1.msra.mxu0 0.0
  %575 = vmatprep.subr.mxu0 0.0
  %576 = vmatpush1.msra.mxu0 0.0
  %577 = vmatprep.subr.mxu0 0.0
  %578 = vmatpush1.msra.mxu0 0.0
  %579 = vmatprep.subr.mxu0 0.0
  %580 = vmatpush1.msra.mxu0 0.0
  %581 = vmatprep.subr.mxu0 0.0
  %582 = vmatpush1.msra.mxu0 0.0
  %583 = vmatprep.subr.mxu0 0.0
  %584 = vmatpush1.msra.mxu0 0.0
  %585 = vmatprep.subr.mxu0 0.0
  %586 = vmatpush1.msra.mxu0 0.0
  %587 = vmatprep.subr.mxu0 0.0
  %588 = vmatpush1.msra.mxu0 0.0
  %589 = vmatprep.subr.mxu0 0.0
  %590 = vmatpush1.msra.mxu0 0.0
  %591 = vmatprep.subr.mxu0 0.0
  %592 = vmatpush1.msra.mxu0 0.0
  %593 = vmatprep.mubr.f32.mxu0 0.0
  %594 = vmatmul.mubr.f32.gmra.mrb[0].mxu0 %v527
  %v595 = vpop.f32.mrb[0].mxu0
  %v596 = vadd.f32 %v524, %v595
  %v597 = vpop.f32.mrb[0].mxu0
  %598 = vdwg.mxu0
  %vm599 = vcmask 31744
  %v600 = vsel %vm599, %v596, -inf
  %601 = vmax.xlane.f32.xlu0 %v600
  %v602 = vpop.xlane.xlu0 %601
  %v603 = vsub.f32 %v596, %v602
  %v604 = vmul.f32 %v603, 1.442695
  %v605 = vpow.pop %v604
  %v606 = vsel %vm599, %v605, 0.0
  %607 = vadd.xlane.f32.xlu0 %v606
  %v608 = vpop.xlane.xlu0 %607
  %v609 = vlog2.pop %v608
  %v610 = vmul.f32 %v609, 0.6931472
  %v611 = vadd.f32 %v602, %v610
  %v612 = vlaneseq
  %v613 = vand.u32 %v612, 127
  %vm614 = vcmp.eq.s32.totalorder %v613, %v118
  %v615 = vsel %vm614, 1, 0
  %v616 = vcvt.s32.f32 %v615
  %v617 = vmul.f32 %v596, %v616
  %v618 = vsel %vm599, %v617, 0.0
  %619 = vadd.xlane.f32.xlu0 %v618
  %v620 = vpop.xlane.xlu0 %619
  %v621 = vsub.f32 %v611, %v620
  %v622 = vsel %vm253, %v621, 0.0
  %623 = vadd.xlane.f32.xlu0 %v622
  %v624 = vpop.xlane.xlu0 %623
  %v625 = vrot.slane %v624, 4
  %v626 = vadd.f32 %v624, %v625
  %v627 = vrot.slane %v626, 2
  %v628 = vadd.f32 %v626, %v627
  %v629 = vrot.slane %v628, 1
  %v630 = vadd.f32 %v628, %v629
  %s631 = vtos %v630
  %v632 = vstv %s631
  %v633 = vmul.f32 %v632, 0.125
  %v634 = vadd.f32 %v292, %v306
  %v635 = vadd.f32 %v634, %v320
  %v636 = vmul.f32 %v337, 3.0
  %v637 = vadd.f32 %v635, %v636
  %v638 = vmul.f32 %v633, 0.5
  %v639 = vadd.f32 %v637, %v638
  %vm640 = vcmp.eq.s32.totalorder %v613, 5
  %v641 = vsel %vm640, %v337, 0.0
  %vm642 = vcmp.eq.s32.totalorder %v613, 4
  %v643 = vsel %vm642, %v633, %v641
  %vm644 = vcmp.eq.s32.totalorder %v613, 3
  %v645 = vsel %vm644, %v320, %v643
  %vm646 = vcmp.eq.s32.totalorder %v613, 2
  %v647 = vsel %vm646, %v306, %v645
  %vm648 = vcmp.eq.s32.totalorder %v613, 1
  %v649 = vsel %vm648, %v292, %v647
  %vm650 = vcmp.eq.s32.totalorder %v613, 0
  %v651 = vsel %vm650, %v639, %v649
  %vm652 = vcmask 57344
  %653 = vst.msk [vmem:[%s13] sm:$0x1] %vm652, %v651
  // Predicated region
  $region54: #{simclr_classifier_forward.1} parent=0 // pred_check
    _
  $region55: #{simclr_classifier_forward.1} parent=0 // pred_check_branch
    %655 = sbr.rel (0) target = $region57
  $region56: #{simclr_classifier_forward.1} parent=0 // pred_region
    _
  $region57: #{simclr_classifier_forward.1} parent=0 // pred_fallthru
    _
  // Predicated region
  $region58: #{simclr_classifier_forward.1} parent=0 // pred_check
    _
  $region59: #{simclr_classifier_forward.1} parent=0 // pred_check_branch
    %657 = sbr.rel (0) target = $region61
  $region60: #{simclr_classifier_forward.1} parent=0 // pred_region
    _
  $region61: #{simclr_classifier_forward.1} parent=0 // pred_fallthru
    _

</llo_original>
